<compile_context>
chip_gen: v7x
topology: tpu7x:2x2x1
jax: 0.10.0
libtpu: 0.0.40
codegen_flags: <defaults>
</compile_context>

<pallas_src>
import jax
import jax.numpy as jnp
from jax.experimental import pallas as pl
from jax.experimental.pallas import tpu as pltpu

_LANE = 128
_SUBLANE = 8


def _round_up(n, m):
    return ((n + m - 1) // m) * m


def _spec(block_shape, index_map, buffer_count=None):
    """BlockSpec with an optional explicit buffer-count hint (graceful fallback)."""
    if buffer_count is not None and hasattr(pl, "Buffered"):
        try:
            return pl.BlockSpec(block_shape, index_map,
                                pipeline_mode=pl.Buffered(buffer_count))
        except TypeError:
            pass
    return pl.BlockSpec(block_shape, index_map)


def _vmem_budget_bytes():
    """Usable VMEM budget: ~85% of physical (128 MiB v5e/v6e, 64 MiB v7x)."""
    cap = None
    try:
        cap = int(getattr(pltpu.get_tpu_info(), "vmem_capacity_bytes", 0)) or None
    except Exception:
        cap = None
    if cap is None:
        cap = 64 << 20          # conservative (v7x-sized) fallback when undetectable
    return int(0.85 * cap)


def prepare_params(w1, b1, w2, b2, *, mm_dtype=jnp.bfloat16):
    """One-time weight prep (hoisted out of the per-call path):
    pad to lane-aligned (Dp, Dp) / (1, Dp) and cast matmul operands to mm_dtype."""
    w1 = jnp.asarray(w1)
    w2 = jnp.asarray(w2)
    b1 = jnp.asarray(b1).reshape(1, -1).astype(jnp.float32)
    b2 = jnp.asarray(b2).reshape(1, -1).astype(jnp.float32)
    D = w1.shape[0]
    Dp = _round_up(D, _LANE)
    if Dp == D:
        w1p, w2p, b1p, b2p = w1.astype(mm_dtype), w2.astype(mm_dtype), b1, b2
    else:
        # Zero padding is mathematically inert: padded columns contribute 0 to
        # every dot product; padded rows of the output are sliced off.
        w1p = jnp.zeros((Dp, Dp), mm_dtype).at[:D, :D].set(w1.astype(mm_dtype))
        w2p = jnp.zeros((Dp, Dp), mm_dtype).at[:D, :D].set(w2.astype(mm_dtype))
        b1p = jnp.zeros((1, Dp), jnp.float32).at[:, :D].set(b1)
        b2p = jnp.zeros((1, Dp), jnp.float32).at[:, :D].set(b2)
    return {"w1": w1p, "b1": b1p, "w2": w2p, "b2": b2p, "dim": D}


def _resident_kernel(x_ref, w1_ref, b1_ref, w2_ref, b2_ref, o_ref):
    """Weight-resident path: one batch tile, full D.  o = x + (relu(xW1+b1)W2+b2)."""
    x = x_ref[...]                                           # (TB, Dp) f32
    h = jnp.dot(x.astype(w1_ref.dtype), w1_ref[...],
                preferred_element_type=jnp.float32) + b1_ref[...]
    h = jnp.maximum(h, 0.0)                                  # ReLU in f32 (VPU)
    y = jnp.dot(h.astype(w2_ref.dtype), w2_ref[...],
                preferred_element_type=jnp.float32) + b2_ref[...]
    o_ref[...] = (x + y).astype(o_ref.dtype)                 # residual add in f32


def _ktiled_kernel(x_ref, w1_ref, b1_ref, w2_ref, b2_ref, o_ref, acc_ref):
    """K-tiled path: tile the hidden (intermediate) dim; accumulate y over k."""
    k = pl.program_id(1)

    @pl.when(k == 0)
    def _():
        acc_ref[...] = jnp.zeros_like(acc_ref)

    x = x_ref[...]                                           # (TB, Dp) f32
    # h_k = relu(x @ W1[:, kTK:(k+1)TK] + b1[kTK:(k+1)TK])   -> (TB, TK)
    h = jnp.dot(x.astype(w1_ref.dtype), w1_ref[...],
                preferred_element_type=jnp.float32) + b1_ref[...]
    h = jnp.maximum(h, 0.0)
    # y += h_k @ W2[kTK:(k+1)TK, :]                           -> (TB, Dp)
    acc_ref[...] += jnp.dot(h.astype(w2_ref.dtype), w2_ref[...],
                            preferred_element_type=jnp.float32)

    @pl.when(k == pl.num_programs(1) - 1)
    def _():
        o_ref[...] = (x + acc_ref[...] + b2_ref[...]).astype(o_ref.dtype)


def residual_block(x, params, *, block_b=None, k_tile=None, force_ktiled=False):
    """x: (B, D) f32; params from prepare_params().  Returns (B, D) f32."""
    x = jnp.asarray(x, jnp.float32)
    B, D = x.shape
    assert D == params["dim"]
    w1, b1, w2, b2 = params["w1"], params["b1"], params["w2"], params["b2"]
    Dp = w1.shape[0]
    mm_bytes = jnp.dtype(w1.dtype).itemsize

    # --- batch padding: sublane multiple only (never rounded up to a full tile) ---
    Bp = _round_up(B, _SUBLANE)
    if Bp == B and Dp == D:
        xp = x                                   # fast path: no activation copy
    else:
        xp = jnp.zeros((Bp, Dp), x.dtype).at[:B, :D].set(x)

    # --- adaptive batch tile ---
    if block_b is None:
        block_b = 1024 if Dp <= 512 else (512 if Dp <= 2048 else 256)
    TB = min(block_b, Bp)
    # Keep both TensorCores busy on v7x when the batch would otherwise be one tile.
    if Bp > _SUBLANE and pl.cdiv(Bp, TB) < 2:
        TB = max(_SUBLANE, _round_up(pl.cdiv(Bp, 2), _SUBLANE))
    nb = pl.cdiv(Bp, TB)

    budget = _vmem_budget_bytes()
    x_bufs = 3 if Dp <= 512 else 2               # deepen x pipeline when mem-bound

    # Weight-resident VMEM need: single-buffered weights/biases + streamed x/o tiles.
    resident_bytes = (2 * Dp * Dp * mm_bytes + 2 * Dp * 4
                      + x_bufs * TB * Dp * 4 + 2 * TB * Dp * 4)
    use_resident = (not force_ktiled) and resident_bytes <= budget

    if use_resident:
        cost = pl.CostEstimate(
            flops=4 * Bp * Dp * Dp,
            transcendentals=0,
            bytes_accessed=2 * Bp * Dp * 4 + 2 * Dp * Dp * mm_bytes + 2 * Dp * 4,
        )
        vmem_limit = min(budget, max(int(1.25 * resident_bytes), 32 << 20))

        def call(hinted):
            bc = (lambda n: n) if hinted else (lambda n: None)
            return pl.pallas_call(
                _resident_kernel,
                out_shape=jax.ShapeDtypeStruct((Bp, Dp), x.dtype),
                grid_spec=pltpu.PrefetchScalarGridSpec(
                    num_scalar_prefetch=0,
                    grid=(nb,),
                    in_specs=[
                        _spec((TB, Dp), lambda i: (i, 0),
                              bc(x_bufs if x_bufs != 2 else None)),  # x: streamed
                        _spec((Dp, Dp), lambda i: (0, 0), bc(1)),    # W1 resident
                        _spec((1, Dp), lambda i: (0, 0), bc(1)),     # b1 resident
                        _spec((Dp, Dp), lambda i: (0, 0), bc(1)),    # W2 resident
                        _spec((1, Dp), lambda i: (0, 0), bc(1)),     # b2 resident
                    ],
                    out_specs=pl.BlockSpec((TB, Dp), lambda i: (i, 0)),
                ),
                compiler_params=pltpu.CompilerParams(
                    dimension_semantics=("parallel",),   # megacore sharding on v7x
                    vmem_limit_bytes=vmem_limit,
                ),
                cost_estimate=cost,
            )(xp, w1, b1, w2, b2)

        try:
            out = call(True)
        except Exception:      # buffer-count hints unsupported -> default buffering
            out = call(False)
        return out[:B, :D]

    # --- K-tiled fallback for large D (e.g. D >~ 3000 on v7x's 64 MiB VMEM):
    # stream (Dp, TK) / (TK, Dp) weight tiles, accumulate the second matmul over
    # an "arbitrary" reduction axis with an f32 scratch accumulator. ---
    TB = min(TB, 256)                            # keep the f32 accumulator small
    nb = pl.cdiv(Bp, TB)

    def ktiled_bytes(tk):
        return (2 * TB * Dp * 4                  # x tiles (double-buffered)
                + 2 * Dp * tk * mm_bytes         # W1 column tiles
                + 2 * tk * 4                     # b1 tiles
                + 2 * tk * Dp * mm_bytes         # W2 row tiles
                + Dp * 4                         # b2 (single-buffered, resident)
                + 2 * TB * Dp * 4                # o tiles (double-buffered)
                + TB * Dp * 4)                   # f32 accumulator scratch

    tk_cap = Dp if k_tile is None else max(_LANE, _round_up(k_tile, _LANE))
    TK = _LANE                                   # always divides Dp (no ragged K tile)
    for cand in (1024, 512, 256, _LANE):
        if cand <= tk_cap and Dp % cand == 0 and ktiled_bytes(cand) <= budget:
            TK = cand
            break
    nk = Dp // TK

    cost = pl.CostEstimate(
        flops=4 * Bp * Dp * Dp,
        transcendentals=0,
        bytes_accessed=2 * Bp * Dp * 4 + nb * 2 * Dp * Dp * mm_bytes + 2 * Dp * 4,
    )
    vmem_limit = min(budget, max(int(1.25 * ktiled_bytes(TK)), 32 << 20))

    def call(hinted):
        bc = (lambda n: n) if hinted else (lambda n: None)
        return pl.pallas_call(
            _ktiled_kernel,
            out_shape=jax.ShapeDtypeStruct((Bp, Dp), x.dtype),
            grid_spec=pltpu.PrefetchScalarGridSpec(
                num_scalar_prefetch=0,
                grid=(nb, nk),
                in_specs=[
                    pl.BlockSpec((TB, Dp), lambda i, k: (i, 0)),   # x (resident over k)
                    pl.BlockSpec((Dp, TK), lambda i, k: (0, k)),   # W1 column tile
                    pl.BlockSpec((1, TK), lambda i, k: (0, k)),    # b1 tile
                    pl.BlockSpec((TK, Dp), lambda i, k: (k, 0)),   # W2 row tile
                    _spec((1, Dp), lambda i, k: (0, 0), bc(1)),    # b2 resident
                ],
                out_specs=pl.BlockSpec((TB, Dp), lambda i, k: (i, 0)),
                scratch_shapes=[pltpu.VMEM((TB, Dp), jnp.float32)],
            ),
            compiler_params=pltpu.CompilerParams(
                dimension_semantics=("parallel", "arbitrary"),
                vmem_limit_bytes=vmem_limit,
            ),
            cost_estimate=cost,
        )(xp, w1, b1, w2, b2)

    try:
        out = call(True)
    except Exception:
        out = call(False)
    return out[:B, :D]


if __name__ == "__main__":
    # Shapes from the spec: x = torch.randn(3, 10), ResidualBlock(dim=10).
    batch, dim = 3, 10

    key = jax.random.PRNGKey(0)
    (kx, kw1, kb1, kw2, kb2, kx2, kw3, kb3, kw4, kb4) = jax.random.split(key, 10)

    bound = 1.0 / jnp.sqrt(jnp.float32(dim))
    x = jax.random.normal(kx, (batch, dim), dtype=jnp.float32)
    w1 = jax.random.uniform(kw1, (dim, dim), jnp.float32, -bound, bound)
    b1 = jax.random.uniform(kb1, (dim,), jnp.float32, -bound, bound)
    w2 = jax.random.uniform(kw2, (dim, dim), jnp.float32, -bound, bound)
    b2 = jax.random.uniform(kb2, (dim,), jnp.float32, -bound, bound)

    def ref_f32(x, w1, b1, w2, b2):
        return x + (jnp.maximum(x @ w1 + b1, 0.0) @ w2 + b2)

    def ref_bf16(x, w1, b1, w2, b2):
        h = jnp.dot(x.astype(jnp.bfloat16), w1.astype(jnp.bfloat16),
                    preferred_element_type=jnp.float32) + b1
        h = jnp.maximum(h, 0.0)
        return x + jnp.dot(h.astype(jnp.bfloat16), w2.astype(jnp.bfloat16),
                           preferred_element_type=jnp.float32) + b2

    # --- weight-resident fast path (the spec's shape) ---
    params = prepare_params(w1, b1, w2, b2)         # one-time prep, hoisted
    out = jax.block_until_ready(residual_block(x, params))
    assert out.shape == (batch, dim)
    assert jnp.allclose(out, ref_bf16(x, w1, b1, w2, b2), atol=2e-3, rtol=2e-3)
    assert jnp.allclose(out, ref_f32(x, w1, b1, w2, b2), atol=3e-2, rtol=3e-2)

    # --- exercise the K-tiled (large-D / v7x) fallback at a small shape ---
    batch2, dim2 = 16, 256
    bound2 = 1.0 / jnp.sqrt(jnp.float32(dim2))
    x2 = jax.random.normal(kx2, (batch2, dim2), dtype=jnp.float32)
    w3 = jax.random.uniform(kw3, (dim2, dim2), jnp.float32, -bound2, bound2)
    b3 = jax.random.uniform(kb3, (dim2,), jnp.float32, -bound2, bound2)
    w4 = jax.random.uniform(kw4, (dim2, dim2), jnp.float32, -bound2, bound2)
    b4 = jax.random.uniform(kb4, (dim2,), jnp.float32, -bound2, bound2)
    params2 = prepare_params(w3, b3, w4, b4)
    out2 = jax.block_until_ready(
        residual_block(x2, params2, force_ktiled=True, k_tile=128))
    assert out2.shape == (batch2, dim2)
    assert jnp.allclose(out2, ref_bf16(x2, w3, b3, w4, b4), atol=1e-2, rtol=1e-2)
    assert jnp.allclose(out2, ref_f32(x2, w3, b3, w4, b4), atol=5e-2, rtol=5e-2)

    print("KERNEL_OK")
</pallas_src>

<mosaic_0001>
module attributes {stable_mosaic.version = 11 : i64} {
  func.func @_resident_kernel(%arg0: i32, %arg1: memref<8x128xf32, #tpu.memory_space<vmem>>, %arg2: memref<128x128xbf16, #tpu.memory_space<vmem>>, %arg3: memref<1x128xf32, #tpu.memory_space<vmem>>, %arg4: memref<128x128xbf16, #tpu.memory_space<vmem>>, %arg5: memref<1x128xf32, #tpu.memory_space<vmem>>, %arg6: memref<8x128xf32, #tpu.memory_space<vmem>>) attributes {dimension_semantics = [#tpu.dimension_semantics<parallel>], iteration_bounds = array<i64: 1>, scalar_prefetch = 0 : i64, scratch_operands = 0 : i64, tpu.core_type = #tpu.core_type<tc>, window_params = [{transform_indices = @transform_0, window_bounds = array<i64: 8, 128>}, {pipeline_mode = #tpu.pipeline_mode<synchronous>, transform_indices = @transform_1, window_bounds = array<i64: 128, 128>}, {pipeline_mode = #tpu.pipeline_mode<synchronous>, transform_indices = @transform_2, window_bounds = array<i64: 1, 128>}, {pipeline_mode = #tpu.pipeline_mode<synchronous>, transform_indices = @transform_3, window_bounds = array<i64: 128, 128>}, {pipeline_mode = #tpu.pipeline_mode<synchronous>, transform_indices = @transform_4, window_bounds = array<i64: 1, 128>}, {transform_indices = @transform_5, window_bounds = array<i64: 8, 128>}]} {
    %c0 = arith.constant 0 : index
    %c0_0 = arith.constant 0 : index
    %0 = vector.load %arg1[%c0, %c0_0] : memref<8x128xf32, #tpu.memory_space<vmem>>, vector<8x128xf32>
    %1 = arith.truncf %0 : vector<8x128xf32> to vector<8x128xbf16>
    %c0_1 = arith.constant 0 : index
    %c0_2 = arith.constant 0 : index
    %2 = vector.load %arg2[%c0_1, %c0_2] : memref<128x128xbf16, #tpu.memory_space<vmem>>, vector<128x128xbf16>
    %cst = arith.constant dense<0.000000e+00> : vector<8x128xf32>
    %3 = tpu.matmul %1, %2, %cst {dimension_numbers = #tpu.dot_dimension_numbers<[1], [0], [0], [1], [0, 0, 1, 1], [], []>} : vector<8x128xbf16>, vector<128x128xbf16>, vector<8x128xf32> -> vector<8x128xf32>
    %c0_3 = arith.constant 0 : index
    %c0_4 = arith.constant 0 : index
    %4 = vector.load %arg3[%c0_3, %c0_4] : memref<1x128xf32, #tpu.memory_space<vmem>>, vector<1x128xf32>
    %5 = vector.broadcast %4 : vector<1x128xf32> to vector<8x128xf32>
    %6 = arith.addf %3, %5 : vector<8x128xf32>
    %cst_5 = arith.constant 0.000000e+00 : f32
    %7 = vector.broadcast %cst_5 : f32 to vector<8x128xf32>
    %8 = arith.maximumf %6, %7 : vector<8x128xf32>
    %9 = arith.truncf %8 : vector<8x128xf32> to vector<8x128xbf16>
    %c0_6 = arith.constant 0 : index
    %c0_7 = arith.constant 0 : index
    %10 = vector.load %arg4[%c0_6, %c0_7] : memref<128x128xbf16, #tpu.memory_space<vmem>>, vector<128x128xbf16>
    %cst_8 = arith.constant dense<0.000000e+00> : vector<8x128xf32>
    %11 = tpu.matmul %9, %10, %cst_8 {dimension_numbers = #tpu.dot_dimension_numbers<[1], [0], [0], [1], [0, 0, 1, 1], [], []>} : vector<8x128xbf16>, vector<128x128xbf16>, vector<8x128xf32> -> vector<8x128xf32>
    %c0_9 = arith.constant 0 : index
    %c0_10 = arith.constant 0 : index
    %12 = vector.load %arg5[%c0_9, %c0_10] : memref<1x128xf32, #tpu.memory_space<vmem>>, vector<1x128xf32>
    %13 = vector.broadcast %12 : vector<1x128xf32> to vector<8x128xf32>
    %14 = arith.addf %11, %13 : vector<8x128xf32>
    %15 = arith.addf %0, %14 : vector<8x128xf32>
    %c0_11 = arith.constant 0 : index
    %c0_12 = arith.constant 0 : index
    %16 = vector.load %arg6[%c0_11, %c0_12] : memref<8x128xf32, #tpu.memory_space<vmem>>, vector<8x128xf32>
    tpu.vector_store %arg6[%c0_11, %c0_12], %15 {strides = array<i32>} : memref<8x128xf32, #tpu.memory_space<vmem>>, vector<8x128xf32>,
    return
  }
  func.func @transform_0(%arg0: i32) -> (i32, i32) {
    %c0_i32 = arith.constant 0 : i32
    %c0_i32_0 = arith.constant 0 : i32
    return %arg0, %c0_i32 : i32, i32
  }
  func.func @transform_1(%arg0: i32) -> (i32, i32) {
    %c0_i32 = arith.constant 0 : i32
    %c0_i32_0 = arith.constant 0 : i32
    %c0_i32_1 = arith.constant 0 : i32
    return %c0_i32, %c0_i32_0 : i32, i32
  }
  func.func @transform_2(%arg0: i32) -> (i32, i32) {
    %c0_i32 = arith.constant 0 : i32
    %c0_i32_0 = arith.constant 0 : i32
    %c0_i32_1 = arith.constant 0 : i32
    return %c0_i32, %c0_i32_0 : i32, i32
  }
  func.func @transform_3(%arg0: i32) -> (i32, i32) {
    %c0_i32 = arith.constant 0 : i32
    %c0_i32_0 = arith.constant 0 : i32
    %c0_i32_1 = arith.constant 0 : i32
    return %c0_i32, %c0_i32_0 : i32, i32
  }
  func.func @transform_4(%arg0: i32) -> (i32, i32) {
    %c0_i32 = arith.constant 0 : i32
    %c0_i32_0 = arith.constant 0 : i32
    %c0_i32_1 = arith.constant 0 : i32
    return %c0_i32, %c0_i32_0 : i32, i32
  }
  func.func @transform_5(%arg0: i32) -> (i32, i32) {
    %c0_i32 = arith.constant 0 : i32
    %c0_i32_0 = arith.constant 0 : i32
    return %arg0, %c0_i32 : i32, i32
  }
}

</mosaic_0001>

<llo_original>
// kernel: tpu_custom_call.1
$region0: #{tpu_custom_call.1}
  #allocation0 [shape = 'u32[]', space=smem, size = 0x4, offset = 0x4, fixed_abs, tag = 'smem constant byte address 0x4 - core index']
  #allocation1 [shape = 'u32[144,128]{1,0:T(1,128)}', space=vmem, size = 0x12000, scoped, tag = 'internal scratch']
  %s0 = inlined_call_operand.hbm [shape: f32[8,128], index: 0, kind: input, shape index: {}]
  %s1 = inlined_call_operand.hbm [shape: bf16[128,128], index: 1, kind: input, shape index: {}]
  %s2 = inlined_call_operand.vmem [shape: f32[1,128], index: 2, kind: input, shape index: {}]
  %s3 = inlined_call_operand.hbm [shape: bf16[128,128], index: 3, kind: input, shape index: {}]
  %s4 = inlined_call_operand.vmem [shape: f32[1,128], index: 4, kind: input, shape index: {}]
  %s5 = inlined_call_operand.hbm [shape: f32[8,128], index: 5, kind: output, shape index: {}]
  %s6 = sld [smem:[#allocation0]]
  $region42: #{tpu_custom_call.1} parent=0
    _
  %s8 = ssub.s32 1, %s6
  %s9 = scalar_select 0, %s8, %s6
  $region1: #{tpu_custom_call.1} parent=0
    #allocation2 [shape = 'u8[4096]{0}', space=vmem, size = 0x1000, scoped, tag = 'input window, operand 0, single buffered']
    #allocation3 [shape = 's32[1]{0}', space=sflag, size = 0x4, scoped, tag = 'scoped memory for tpu_custom_call.1']
    #allocation4 [shape = 's32[1]{0}', space=sflag, size = 0x4, scoped, tag = 'scoped memory for tpu_custom_call.1']
    #allocation5 [shape = 'u8[32768]{0}', space=vmem, size = 0x8000, scoped, tag = 'input window, operand 1, single buffered']
    #allocation6 [shape = 's32[1]{0}', space=sflag, size = 0x4, scoped, tag = 'scoped memory for tpu_custom_call.1']
    #allocation7 [shape = 'u8[32768]{0}', space=vmem, size = 0x8000, scoped, tag = 'input window, operand 3, single buffered']
    #allocation8 [shape = 'u8[4096]{0}', space=vmem, size = 0x1000, scoped, tag = 'output window, operand 0, single buffered']
    %10 = vsyncpa [#allocation3], 0
    %11 = vsyncpa [#allocation6], 0
    %12 = vsyncpa [#allocation4], 0
    // Predicated region
    $region2: #{tpu_custom_call.1} parent=1 // pred_check
      _
    $region3: #{tpu_custom_call.1} parent=1 // pred_check_branch
      %14 = sbr.rel (0) target = $region5
    $region4: #{tpu_custom_call.1} parent=1 // pred_region
      %s16 = ssub.s32 128, 128
      %17 = vsyncadd [#allocation3], %s16
      %s19 = sshll.u32 [#allocation2], 4
      %s20 = int_to_ptr.vmem [resolvable:$true] %s19
      %22 = dma.hbm_to_vmem [thread:$0]  %s0, 128, %s20, [#allocation3]
    $region5: #{tpu_custom_call.1} parent=1 // pred_fallthru
      _
    // Predicated region
    $region6: #{tpu_custom_call.1} parent=1 // pred_check
      _
    $region7: #{tpu_custom_call.1} parent=1 // pred_check_branch
      %24 = sbr.rel (0) target = $region9
    $region8: #{tpu_custom_call.1} parent=1 // pred_region
      %s26 = ssub.s32 1024, 1024
      %27 = vsyncadd [#allocation6], %s26
      %s28 = sshll.u32 [#allocation5], 4
      %s29 = int_to_ptr.vmem [resolvable:$true] %s28
      %34 = dma.hbm_to_vmem [thread:$0]  %s1, 1024, %s29, [#allocation6], 64, 64, 4
    $region9: #{tpu_custom_call.1} parent=1 // pred_fallthru
      _
    // Predicated region
    $region10: #{tpu_custom_call.1} parent=1 // pred_check
      _
    $region11: #{tpu_custom_call.1} parent=1 // pred_check_branch
      %36 = sbr.rel (0) target = $region13
    $region12: #{tpu_custom_call.1} parent=1 // pred_region
      _
    $region13: #{tpu_custom_call.1} parent=1 // pred_fallthru
      _
    // Predicated region
    $region14: #{tpu_custom_call.1} parent=1 // pred_check
      _
    $region15: #{tpu_custom_call.1} parent=1 // pred_check_branch
      %38 = sbr.rel (0) target = $region17
    $region16: #{tpu_custom_call.1} parent=1 // pred_region
      %s40 = ssub.s32 1024, 1024
      %41 = vsyncadd [#allocation6], %s40
      %s42 = sshll.u32 [#allocation7], 4
      %s43 = int_to_ptr.vmem [resolvable:$true] %s42
      %48 = dma.hbm_to_vmem [thread:$0]  %s3, 1024, %s43, [#allocation6], 64, 64, 4
    $region17: #{tpu_custom_call.1} parent=1 // pred_fallthru
      _
    // Predicated region
    $region18: #{tpu_custom_call.1} parent=1 // pred_check
      _
    $region19: #{tpu_custom_call.1} parent=1 // pred_check_branch
      %50 = sbr.rel (0) target = $region21
    $region20: #{tpu_custom_call.1} parent=1 // pred_region
      _
    $region21: #{tpu_custom_call.1} parent=1 // pred_fallthru
      _
    // Predicated region
    $region22: #{tpu_custom_call.1} parent=1 // pred_check
      _
    $region23: #{tpu_custom_call.1} parent=1 // pred_check_branch
      %52 = sbr.rel (0) target = $region25
    $region24: #{tpu_custom_call.1} parent=1 // pred_region
      %53 = dma.done [#allocation3], 128
    $region25: #{tpu_custom_call.1} parent=1 // pred_fallthru
      _
    // Predicated region
    $region26: #{tpu_custom_call.1} parent=1 // pred_check
      _
    $region27: #{tpu_custom_call.1} parent=1 // pred_check_branch
      %55 = sbr.rel (0) target = $region29
    $region28: #{tpu_custom_call.1} parent=1 // pred_region
      %56 = dma.done [#allocation6], 1024
    $region29: #{tpu_custom_call.1} parent=1 // pred_fallthru
      _
    // Predicated region
    $region30: #{tpu_custom_call.1} parent=1 // pred_check
      _
    $region31: #{tpu_custom_call.1} parent=1 // pred_check_branch
      %58 = sbr.rel (0) target = $region33
    $region32: #{tpu_custom_call.1} parent=1 // pred_region
      %59 = dma.done [#allocation6], 1024
    $region33: #{tpu_custom_call.1} parent=1 // pred_fallthru
      _
    %v61 = vld [vmem:[#allocation2] sm:$0xff]
    %v62 = vpack.c.bf16 %v61, %v61
    %v63 = vld [vmem:[#allocation5] sm:$0xf]
    %v64 = vld [vmem:[#allocation5 + $0x4] sm:$0xf]
    %v65 = vld [vmem:[#allocation5 + $0x8] sm:$0xf]
    %v66 = vld [vmem:[#allocation5 + $0xc] sm:$0xf]
    %v67 = vld [vmem:[#allocation5 + $0x10] sm:$0xf]
    %v68 = vld [vmem:[#allocation5 + $0x14] sm:$0xf]
    %v69 = vld [vmem:[#allocation5 + $0x18] sm:$0xf]
    %v70 = vld [vmem:[#allocation5 + $0x1c] sm:$0xf]
    %v71 = vld [vmem:[#allocation5 + $0x20] sm:$0xf]
    %v72 = vld [vmem:[#allocation5 + $0x24] sm:$0xf]
    %v73 = vld [vmem:[#allocation5 + $0x28] sm:$0xf]
    %v74 = vld [vmem:[#allocation5 + $0x2c] sm:$0xf]
    %v75 = vld [vmem:[#allocation5 + $0x30] sm:$0xf]
    %v76 = vld [vmem:[#allocation5 + $0x34] sm:$0xf]
    %v77 = vld [vmem:[#allocation5 + $0x38] sm:$0xf]
    %v78 = vld [vmem:[#allocation5 + $0x3c] sm:$0xf]
    %v79 = vld [vmem:[%s2] sm:$0x1]
    %v81 = vlaneseq
    %v82 = vshrl.u32 %v81, 7
    %v83 = vsub.s32 0, %v82
    %v84 = vrot.slane %v79, %v83
    %v102 = vunpack.c.l.b16 %v63
    %v103 = vunpack.c.l.b16 %v64
    %v104 = vunpack.c.l.b16 %v65
    %v105 = vunpack.c.l.b16 %v66
    %v106 = vunpack.c.l.b16 %v67
    %v107 = vunpack.c.l.b16 %v68
    %v108 = vunpack.c.l.b16 %v69
    %v109 = vunpack.c.l.b16 %v70
    %v110 = vunpack.c.l.b16 %v71
    %v111 = vunpack.c.l.b16 %v72
    %v112 = vunpack.c.l.b16 %v73
    %v113 = vunpack.c.l.b16 %v74
    %v114 = vunpack.c.l.b16 %v75
    %v115 = vunpack.c.l.b16 %v76
    %v116 = vunpack.c.l.b16 %v77
    %v117 = vunpack.c.l.b16 %v78
    %v118 = vpack.c.b16 %v103, %v102
    %v119 = vpack.c.b16 %v105, %v104
    %v120 = vpack.c.b16 %v107, %v106
    %v121 = vpack.c.b16 %v109, %v108
    %v122 = vpack.c.b16 %v111, %v110
    %v123 = vpack.c.b16 %v113, %v112
    %v124 = vpack.c.b16 %v115, %v114
    %v125 = vpack.c.b16 %v117, %v116
    %134 = vmatprep.subr.bf16.mxu0 0
    %135 = vmatpush1.bf16.msra.mxu0 %v118
    %136 = vmatprep.subr.bf16.mxu0 0
    %137 = vmatpush1.bf16.msra.mxu0 %v119
    %138 = vmatprep.subr.bf16.mxu0 0
    %139 = vmatpush1.bf16.msra.mxu0 %v120
    %140 = vmatprep.subr.bf16.mxu0 0
    %141 = vmatpush1.bf16.msra.mxu0 %v121
    %142 = vmatprep.subr.bf16.mxu0 0
    %143 = vmatpush1.bf16.msra.mxu0 %v122
    %144 = vmatprep.subr.bf16.mxu0 0
    %145 = vmatpush1.bf16.msra.mxu0 %v123
    %146 = vmatprep.subr.bf16.mxu0 0
    %147 = vmatpush1.bf16.msra.mxu0 %v124
    %148 = vmatprep.subr.bf16.mxu0 0
    %149 = vmatpush1.bf16.msra.mxu0 %v125
    %150 = vmatprep.subr.bf16.mxu0 0
    %151 = vmatpush1.bf16.msra.mxu0 0
    %152 = vmatprep.subr.bf16.mxu0 0
    %153 = vmatpush1.bf16.msra.mxu0 0
    %154 = vmatprep.subr.bf16.mxu0 0
    %155 = vmatpush1.bf16.msra.mxu0 0
    %156 = vmatprep.subr.bf16.mxu0 0
    %157 = vmatpush1.bf16.msra.mxu0 0
    %158 = vmatprep.subr.bf16.mxu0 0
    %159 = vmatpush1.bf16.msra.mxu0 0
    %160 = vmatprep.subr.bf16.mxu0 0
    %161 = vmatpush1.bf16.msra.mxu0 0
    %162 = vmatprep.subr.bf16.mxu0 0
    %163 = vmatpush1.bf16.msra.mxu0 0
    %164 = vmatprep.subr.bf16.mxu0 0
    %165 = vmatpush1.bf16.msra.mxu0 0
    %166 = vmatprep.mubr.bf16.mxu0 0
    %167 = vmatmul.mubr.bf16.gmra.mrb[0].mxu0 %v62
    %v168 = vpop.f32.mrb[0].mxu0
    %v169 = vadd.f32 %v84, %v168
    %v170 = vpop.f32.mrb[0].mxu0
    %v171 = vpop.f32.mrb[0].mxu0
    %v172 = vpop.f32.mrb[0].mxu0
    %173 = vdwg.mxu0
    %v174 = vmax.f32 %v169, 0.0
    %v175 = vpack.c.bf16 %v174, %v174
    %v176 = vld [vmem:[#allocation7] sm:$0xf]
    %v177 = vld [vmem:[#allocation7 + $0x4] sm:$0xf]
    %v178 = vld [vmem:[#allocation7 + $0x8] sm:$0xf]
    %v179 = vld [vmem:[#allocation7 + $0xc] sm:$0xf]
    %v180 = vld [vmem:[#allocation7 + $0x10] sm:$0xf]
    %v181 = vld [vmem:[#allocation7 + $0x14] sm:$0xf]
    %v182 = vld [vmem:[#allocation7 + $0x18] sm:$0xf]
    %v183 = vld [vmem:[#allocation7 + $0x1c] sm:$0xf]
    %v184 = vld [vmem:[#allocation7 + $0x20] sm:$0xf]
    %v185 = vld [vmem:[#allocation7 + $0x24] sm:$0xf]
    %v186 = vld [vmem:[#allocation7 + $0x28] sm:$0xf]
    %v187 = vld [vmem:[#allocation7 + $0x2c] sm:$0xf]
    %v188 = vld [vmem:[#allocation7 + $0x30] sm:$0xf]
    %v189 = vld [vmem:[#allocation7 + $0x34] sm:$0xf]
    %v190 = vld [vmem:[#allocation7 + $0x38] sm:$0xf]
    %v191 = vld [vmem:[#allocation7 + $0x3c] sm:$0xf]
    %v192 = vld [vmem:[%s4] sm:$0x1]
    %v194 = vlaneseq
    %v195 = vshrl.u32 %v194, 7
    %v196 = vsub.s32 0, %v195
    %v197 = vrot.slane %v192, %v196
    %v215 = vunpack.c.l.b16 %v176
    %v216 = vunpack.c.l.b16 %v177
    %v217 = vunpack.c.l.b16 %v178
    %v218 = vunpack.c.l.b16 %v179
    %v219 = vunpack.c.l.b16 %v180
    %v220 = vunpack.c.l.b16 %v181
    %v221 = vunpack.c.l.b16 %v182
    %v222 = vunpack.c.l.b16 %v183
    %v223 = vunpack.c.l.b16 %v184
    %v224 = vunpack.c.l.b16 %v185
    %v225 = vunpack.c.l.b16 %v186
    %v226 = vunpack.c.l.b16 %v187
    %v227 = vunpack.c.l.b16 %v188
    %v228 = vunpack.c.l.b16 %v189
    %v229 = vunpack.c.l.b16 %v190
    %v230 = vunpack.c.l.b16 %v191
    %v231 = vpack.c.b16 %v216, %v215
    %v232 = vpack.c.b16 %v218, %v217
    %v233 = vpack.c.b16 %v220, %v219
    %v234 = vpack.c.b16 %v222, %v221
    %v235 = vpack.c.b16 %v224, %v223
    %v236 = vpack.c.b16 %v226, %v225
    %v237 = vpack.c.b16 %v228, %v227
    %v238 = vpack.c.b16 %v230, %v229
    %247 = vmatprep.subr.bf16.mxu0 0
    %248 = vmatpush1.bf16.msra.mxu0 %v231
    %249 = vmatprep.subr.bf16.mxu0 0
    %250 = vmatpush1.bf16.msra.mxu0 %v232
    %251 = vmatprep.subr.bf16.mxu0 0
    %252 = vmatpush1.bf16.msra.mxu0 %v233
    %253 = vmatprep.subr.bf16.mxu0 0
    %254 = vmatpush1.bf16.msra.mxu0 %v234
    %255 = vmatprep.subr.bf16.mxu0 0
    %256 = vmatpush1.bf16.msra.mxu0 %v235
    %257 = vmatprep.subr.bf16.mxu0 0
    %258 = vmatpush1.bf16.msra.mxu0 %v236
    %259 = vmatprep.subr.bf16.mxu0 0
    %260 = vmatpush1.bf16.msra.mxu0 %v237
    %261 = vmatprep.subr.bf16.mxu0 0
    %262 = vmatpush1.bf16.msra.mxu0 %v238
    %263 = vmatprep.subr.bf16.mxu0 0
    %264 = vmatpush1.bf16.msra.mxu0 0
    %265 = vmatprep.subr.bf16.mxu0 0
    %266 = vmatpush1.bf16.msra.mxu0 0
    %267 = vmatprep.subr.bf16.mxu0 0
    %268 = vmatpush1.bf16.msra.mxu0 0
    %269 = vmatprep.subr.bf16.mxu0 0
    %270 = vmatpush1.bf16.msra.mxu0 0
    %271 = vmatprep.subr.bf16.mxu0 0
    %272 = vmatpush1.bf16.msra.mxu0 0
    %273 = vmatprep.subr.bf16.mxu0 0
    %274 = vmatpush1.bf16.msra.mxu0 0
    %275 = vmatprep.subr.bf16.mxu0 0
    %276 = vmatpush1.bf16.msra.mxu0 0
    %277 = vmatprep.subr.bf16.mxu0 0
    %278 = vmatpush1.bf16.msra.mxu0 0
    %279 = vmatprep.mubr.bf16.mxu0 0
    %280 = vmatmul.mubr.bf16.gmra.mrb[0].mxu0 %v175
    %v281 = vpop.f32.mrb[0].mxu0
    %v282 = vadd.f32 %v197, %v281
    %v283 = vpop.f32.mrb[0].mxu0
    %v284 = vpop.f32.mrb[0].mxu0
    %v285 = vpop.f32.mrb[0].mxu0
    %286 = vdwg.mxu0
    %v287 = vadd.f32 %v61, %v282
    %288 = vst [vmem:[#allocation8] sm:$0xff] %v287
    // Predicated region
    $region34: #{tpu_custom_call.1} parent=1 // pred_check
      _
    $region35: #{tpu_custom_call.1} parent=1 // pred_check_branch
      %290 = sbr.rel (0) target = $region37
    $region36: #{tpu_custom_call.1} parent=1 // pred_region
      %s292 = ssub.s32 128, 128
      %293 = vsyncadd [#allocation4], %s292
      %s295 = sshll.u32 [#allocation8], 4
      %s296 = int_to_ptr.vmem [resolvable:$true] %s295
      %298 = dma.vmem_to_hbm [thread:$0]  %s296, 128, %s5, [#allocation4]
    $region37: #{tpu_custom_call.1} parent=1 // pred_fallthru
      _
    // Predicated region
    $region38: #{tpu_custom_call.1} parent=1 // pred_check
      _
    $region39: #{tpu_custom_call.1} parent=1 // pred_check_branch
      %300 = sbr.rel (0) target = $region41
    $region40: #{tpu_custom_call.1} parent=1 // pred_region
      %301 = dma.done [#allocation4], 128
    $region41: #{tpu_custom_call.1} parent=1 // pred_fallthru
      _
    %302 = vsyncpa [#allocation3], 1
    %303 = vsyncpa [#allocation6], 1
    %304 = vsyncpa [#allocation4], 1

</llo_original>
